<compile_context>
chip_gen: v6e
topology: v6e:2x2x1
jax: 0.10.0
libtpu: 0.0.40
codegen_flags: <defaults>
</compile_context>

<pallas_src>
import math

import jax
import jax.numpy as jnp
from jax.experimental import pallas as pl
from jax.experimental.pallas import tpu as pltpu


def attention_kernel(x_ref, wqkv_ref, wout_ref, bout_ref, o_ref, acc_ref):
    """One (batch, head) grid step: fused QKV proj -> softmax -> PV -> out-proj accumulate."""
    h = pl.program_id(1)
    n_heads = pl.num_programs(1)
    dim_head = wout_ref.shape[1]

    x = x_ref[0]                                            # (N, dim) bf16

    # Fused per-head QKV projection: one MXU matmul with output width 3*dim_head.
    qkv = jnp.dot(x, wqkv_ref[0], preferred_element_type=jnp.float32)    # (N, 3*dh) f32
    q = qkv[:, :dim_head].astype(jnp.bfloat16)              # softmax scale pre-folded into W_q
    k = qkv[:, dim_head:2 * dim_head].astype(jnp.bfloat16)
    v = qkv[:, 2 * dim_head:].astype(jnp.bfloat16)

    # Scores (bf16 in, f32 accumulate) + numerically stable softmax, delayed normalization.
    s = jnp.einsum('nk,mk->nm', q, k, preferred_element_type=jnp.float32)  # (N, N) f32
    m = jnp.max(s, axis=-1, keepdims=True)
    p = jnp.exp(s - m)                                      # unnormalized probabilities, f32
    l = jnp.sum(p, axis=-1, keepdims=True)                  # (N, 1) f32

    ctx = jnp.einsum('nm,mk->nk', p.astype(jnp.bfloat16), v,
                     preferred_element_type=jnp.float32)    # (N, dh) f32
    ctx = ctx * pl.reciprocal(l, approx=True)               # normalize the small tensor only

    # Per-head contribution of the output projection, reduced into the f32 accumulator.
    y = jnp.einsum('nk,kd->nd', ctx.astype(jnp.bfloat16), wout_ref[0],
                   preferred_element_type=jnp.float32)      # (N, dim) f32

    @pl.when(h == 0)
    def _init():
        acc_ref[...] = bout_ref[...] + y                    # bias added exactly once

    @pl.when(h != 0)
    def _accumulate():
        acc_ref[...] += y

    @pl.when(h == n_heads - 1)
    def _store():
        o_ref[0] = acc_ref[...].astype(o_ref.dtype)


def _vmem_limit_bytes():
    # Generation-aware VMEM budget: ~3/4 of physical capacity, capped below 100 MiB.
    try:
        cap = pltpu.get_tpu_info().vmem_capacity_bytes
    except Exception:
        cap = 64 * 1024 * 1024
    return int(min(cap * 3 // 4, 100 * 1024 * 1024))


def attention_forward(x, w_qkv, w_out, b_out, *, heads, dim_head):
    B, N, dim = x.shape
    inner = heads * dim_head
    scale = dim_head ** (-0.5)

    # Host-side weight prep (f32 math, then bf16): fold the softmax scale into W_q and fuse
    # Q/K/V along the last axis into a single (heads, dim, 3*dim_head) tensor.
    w_q = (w_qkv[:, :inner] * scale).reshape(dim, heads, dim_head)
    w_k = w_qkv[:, inner:2 * inner].reshape(dim, heads, dim_head)
    w_v = w_qkv[:, 2 * inner:].reshape(dim, heads, dim_head)
    w_qkv_h = jnp.concatenate([w_q, w_k, w_v], axis=-1)                 # (dim, heads, 3*dh)
    w_qkv_h = jnp.transpose(w_qkv_h, (1, 0, 2)).astype(jnp.bfloat16)    # (heads, dim, 3*dh)
    w_out_h = w_out.reshape(heads, dim_head, dim).astype(jnp.bfloat16)  # (heads, dh, dim)
    b_f32 = b_out.astype(jnp.float32)
    x_bf = x.astype(jnp.bfloat16)

    return pl.pallas_call(
        attention_kernel,
        out_shape=jax.ShapeDtypeStruct((B, N, dim), x.dtype),
        grid_spec=pltpu.PrefetchScalarGridSpec(
            num_scalar_prefetch=0,
            grid=(B, heads),
            in_specs=[
                # x: same block across the heads axis -> fetched once per batch element.
                pl.BlockSpec((1, N, dim), lambda b, h: (b, 0, 0)),
                # fused (scaled) per-head QKV weights.
                pl.BlockSpec((1, dim, 3 * dim_head), lambda b, h: (h, 0, 0)),
                # per-head slice of the output projection.
                pl.BlockSpec((1, dim_head, dim), lambda b, h: (h, 0, 0)),
                # output bias.
                pl.BlockSpec((1, dim), lambda b, h: (0, 0)),
            ],
            out_specs=pl.BlockSpec((1, N, dim), lambda b, h: (b, 0, 0)),
            scratch_shapes=[pltpu.VMEM((N, dim), jnp.float32)],
        ),
        compiler_params=pltpu.CompilerParams(
            dimension_semantics=("parallel", "arbitrary"),
            vmem_limit_bytes=_vmem_limit_bytes(),
        ),
    )(x_bf, w_qkv_h, w_out_h, b_f32)


def reference_forward(x, w_qkv, w_out, b_out, *, heads, dim_head):
    # Pure-JAX f32 reference mirroring the PyTorch module.
    B, N, dim = x.shape
    inner = heads * dim_head
    qkv = x @ w_qkv                                                     # (B, N, 3*inner)
    q, k, v = jnp.split(qkv, 3, axis=-1)

    def to_heads(t):
        return t.reshape(B, N, heads, dim_head).transpose(0, 2, 1, 3)   # (B, h, N, d)

    q, k, v = map(to_heads, (q, k, v))
    dots = jnp.einsum('bhnd,bhmd->bhnm', q, k) * (dim_head ** -0.5)
    attn = jax.nn.softmax(dots, axis=-1)
    out = jnp.einsum('bhnm,bhmd->bhnd', attn, v)
    out = out.transpose(0, 2, 1, 3).reshape(B, N, inner)
    return out @ w_out + b_out


if __name__ == "__main__":
    # Small shapes consistent with the module.
    B, N, dim = 2, 8, 32
    heads, dim_head = 4, 16
    inner = heads * dim_head                    # 64 != dim -> project_out = True

    key = jax.random.PRNGKey(0)
    kx, kqkv, kw, kb = jax.random.split(key, 4)

    x = jax.random.normal(kx, (B, N, dim), dtype=jnp.float32)

    # Deterministic parameter init (PyTorch Linear-style uniform bounds).
    bound_qkv = 1.0 / math.sqrt(dim)
    w_qkv = jax.random.uniform(kqkv, (dim, 3 * inner), jnp.float32,
                               minval=-bound_qkv, maxval=bound_qkv)
    bound_out = 1.0 / math.sqrt(inner)
    w_out = jax.random.uniform(kw, (inner, dim), jnp.float32,
                               minval=-bound_out, maxval=bound_out)
    b_out = jax.random.uniform(kb, (1, dim), jnp.float32,
                               minval=-bound_out, maxval=bound_out)

    y = attention_forward(x, w_qkv, w_out, b_out, heads=heads, dim_head=dim_head)
    y = jax.block_until_ready(y)

    y_ref = reference_forward(x, w_qkv, w_out, b_out, heads=heads, dim_head=dim_head)
    assert y.shape == (B, N, dim)
    # bf16 MXU inputs + approximate reciprocal vs f32 reference -> loosened tolerance.
    assert jnp.allclose(y, y_ref, atol=2e-2, rtol=2e-2), float(jnp.max(jnp.abs(y - y_ref)))

    print("KERNEL_OK")
</pallas_src>

<mosaic_0001>
module attributes {stable_mosaic.version = 11 : i64} {
  func.func @attention_kernel(%arg0: i32, %arg1: i32, %arg2: memref<1x8x32xbf16, #tpu.memory_space<vmem>>, %arg3: memref<1x32x48xbf16, #tpu.memory_space<vmem>>, %arg4: memref<1x16x32xbf16, #tpu.memory_space<vmem>>, %arg5: memref<1x32xf32, #tpu.memory_space<vmem>>, %arg6: memref<1x8x32xf32, #tpu.memory_space<vmem>>, %arg7: memref<8x32xf32, #tpu.memory_space<vmem>>) attributes {dimension_semantics = [#tpu.dimension_semantics<parallel>, #tpu.dimension_semantics<arbitrary>], iteration_bounds = array<i64: 2, 4>, scalar_prefetch = 0 : i64, scratch_operands = 1 : i64, tpu.core_type = #tpu.core_type<tc>, window_params = [{transform_indices = @transform_0, window_bounds = array<i64: 1, 8, 32>}, {transform_indices = @transform_1, window_bounds = array<i64: 1, 32, 48>}, {transform_indices = @transform_2, window_bounds = array<i64: 1, 16, 32>}, {pipeline_mode = #tpu.pipeline_mode<synchronous>, transform_indices = @transform_3, window_bounds = array<i64: 1, 32>}, {transform_indices = @transform_4, window_bounds = array<i64: 1, 8, 32>}]} {
    %c0 = arith.constant 0 : index
    %c0_0 = arith.constant 0 : index
    %c0_1 = arith.constant 0 : index
    %0 = vector.load %arg2[%c0, %c0_0, %c0_1] : memref<1x8x32xbf16, #tpu.memory_space<vmem>>, vector<1x8x32xbf16>
    %1 = vector.shape_cast %0 : vector<1x8x32xbf16> to vector<8x32xbf16>
    %c0_2 = arith.constant 0 : index
    %c0_3 = arith.constant 0 : index
    %c0_4 = arith.constant 0 : index
    %2 = vector.load %arg3[%c0_2, %c0_3, %c0_4] : memref<1x32x48xbf16, #tpu.memory_space<vmem>>, vector<1x32x48xbf16>
    %3 = vector.shape_cast %2 : vector<1x32x48xbf16> to vector<32x48xbf16>
    %cst = arith.constant dense<0.000000e+00> : vector<8x48xf32>
    %4 = tpu.matmul %1, %3, %cst {dimension_numbers = #tpu.dot_dimension_numbers<[1], [0], [0], [1], [0, 0, 1, 1], [], []>} : vector<8x32xbf16>, vector<32x48xbf16>, vector<8x48xf32> -> vector<8x48xf32>
    %5 = vector.extract_strided_slice %4 {offsets = [0, 0], sizes = [8, 16], strides = [1, 1]} : vector<8x48xf32> to vector<8x16xf32>
    %6 = arith.truncf %5 : vector<8x16xf32> to vector<8x16xbf16>
    %7 = vector.extract_strided_slice %4 {offsets = [0, 16], sizes = [8, 16], strides = [1, 1]} : vector<8x48xf32> to vector<8x16xf32>
    %8 = arith.truncf %7 : vector<8x16xf32> to vector<8x16xbf16>
    %9 = vector.extract_strided_slice %4 {offsets = [0, 32], sizes = [8, 16], strides = [1, 1]} : vector<8x48xf32> to vector<8x16xf32>
    %10 = arith.truncf %9 : vector<8x16xf32> to vector<8x16xbf16>
    "tpu.trace_start"() <{level = 10 : i32, message = "nk,mk->nm"}> : () -> ()
    %cst_5 = arith.constant dense<0.000000e+00> : vector<8x8xf32>
    %11 = tpu.matmul %6, %8, %cst_5 {dimension_numbers = #tpu.dot_dimension_numbers<[1], [1], [0], [0], [0, 0, 1, 0], [], []>} : vector<8x16xbf16>, vector<8x16xbf16>, vector<8x8xf32> -> vector<8x8xf32>
    "tpu.trace_stop"() : () -> ()
    %cst_6 = arith.constant dense<0xFF800000> : vector<8xf32>
    %12 = vector.multi_reduction <maximumf>, %11, %cst_6 [1] : vector<8x8xf32> to vector<8xf32>
    %13 = vector.shape_cast %12 : vector<8xf32> to vector<8x1xf32>
    %14 = vector.broadcast %13 : vector<8x1xf32> to vector<8x8xf32>
    %15 = arith.subf %11, %14 : vector<8x8xf32>
    %16 = math.exp %15 : vector<8x8xf32>
    %cst_7 = arith.constant dense<0.000000e+00> : vector<8xf32>
    %17 = vector.multi_reduction <add>, %16, %cst_7 [1] : vector<8x8xf32> to vector<8xf32>
    %18 = vector.shape_cast %17 : vector<8xf32> to vector<8x1xf32>
    %19 = arith.truncf %16 : vector<8x8xf32> to vector<8x8xbf16>
    "tpu.trace_start"() <{level = 10 : i32, message = "nm,mk->nk"}> : () -> ()
    %cst_8 = arith.constant dense<0.000000e+00> : vector<8x16xf32>
    %20 = tpu.matmul %19, %10, %cst_8 {dimension_numbers = #tpu.dot_dimension_numbers<[1], [0], [0], [1], [0, 0, 1, 1], [], []>} : vector<8x8xbf16>, vector<8x16xbf16>, vector<8x16xf32> -> vector<8x16xf32>
    "tpu.trace_stop"() : () -> ()
    %21 = tpu.reciprocal %18 {approx = true} : vector<8x1xf32> -> vector<8x1xf32>
    %22 = vector.broadcast %21 : vector<8x1xf32> to vector<8x16xf32>
    %23 = arith.mulf %20, %22 : vector<8x16xf32>
    %24 = arith.truncf %23 : vector<8x16xf32> to vector<8x16xbf16>
    %c0_9 = arith.constant 0 : index
    %c0_10 = arith.constant 0 : index
    %c0_11 = arith.constant 0 : index
    %25 = vector.load %arg4[%c0_9, %c0_10, %c0_11] : memref<1x16x32xbf16, #tpu.memory_space<vmem>>, vector<1x16x32xbf16>
    %26 = vector.shape_cast %25 : vector<1x16x32xbf16> to vector<16x32xbf16>
    "tpu.trace_start"() <{level = 10 : i32, message = "nk,kd->nd"}> : () -> ()
    %cst_12 = arith.constant dense<0.000000e+00> : vector<8x32xf32>
    %27 = tpu.matmul %24, %26, %cst_12 {dimension_numbers = #tpu.dot_dimension_numbers<[1], [0], [0], [1], [0, 0, 1, 1], [], []>} : vector<8x16xbf16>, vector<16x32xbf16>, vector<8x32xf32> -> vector<8x32xf32>
    %c0_i32 = arith.constant 0 : i32
    "tpu.trace_stop"() : () -> ()
    %28 = arith.cmpi eq, %arg1, %c0_i32 : i32
    %29 = arith.extui %28 : i1 to i32
    %c0_i32_13 = arith.constant 0 : i32
    %30 = arith.cmpi ne, %29, %c0_i32_13 : i32
    scf.if %30 {
      %c0_17 = arith.constant 0 : index
      %c0_18 = arith.constant 0 : index
      %37 = vector.load %arg5[%c0_17, %c0_18] : memref<1x32xf32, #tpu.memory_space<vmem>>, vector<1x32xf32>
      %38 = vector.broadcast %37 : vector<1x32xf32> to vector<8x32xf32>
      %39 = arith.addf %38, %27 : vector<8x32xf32>
      %c0_19 = arith.constant 0 : index
      %c0_20 = arith.constant 0 : index
      %40 = vector.load %arg7[%c0_19, %c0_20] : memref<8x32xf32, #tpu.memory_space<vmem>>, vector<8x32xf32>
      tpu.vector_store %arg7[%c0_19, %c0_20], %39 {strides = array<i32>} : memref<8x32xf32, #tpu.memory_space<vmem>>, vector<8x32xf32>,
    } else {
    }
    %c0_i32_14 = arith.constant 0 : i32
    %31 = arith.cmpi ne, %arg1, %c0_i32_14 : i32
    %32 = arith.extui %31 : i1 to i32
    %c0_i32_15 = arith.constant 0 : i32
    %33 = arith.cmpi ne, %32, %c0_i32_15 : i32
    scf.if %33 {
      %c0_17 = arith.constant 0 : index
      %c0_18 = arith.constant 0 : index
      %37 = vector.load %arg7[%c0_17, %c0_18] : memref<8x32xf32, #tpu.memory_space<vmem>>, vector<8x32xf32>
      %38 = arith.addf %37, %27 : vector<8x32xf32>
      %c0_19 = arith.constant 0 : index
      %c0_20 = arith.constant 0 : index
      %39 = vector.load %arg7[%c0_19, %c0_20] : memref<8x32xf32, #tpu.memory_space<vmem>>, vector<8x32xf32>
      tpu.vector_store %arg7[%c0_19, %c0_20], %38 {strides = array<i32>} : memref<8x32xf32, #tpu.memory_space<vmem>>, vector<8x32xf32>,
    } else {
    }
    %c3_i32 = arith.constant 3 : i32
    %34 = arith.cmpi eq, %arg1, %c3_i32 : i32
    %35 = arith.extui %34 : i1 to i32
    %c0_i32_16 = arith.constant 0 : i32
    %36 = arith.cmpi ne, %35, %c0_i32_16 : i32
    scf.if %36 {
      %c0_17 = arith.constant 0 : index
      %c0_18 = arith.constant 0 : index
      %37 = vector.load %arg7[%c0_17, %c0_18] : memref<8x32xf32, #tpu.memory_space<vmem>>, vector<8x32xf32>
      %c0_19 = arith.constant 0 : index
      %c0_20 = arith.constant 0 : index
      %c0_21 = arith.constant 0 : index
      %38 = vector.load %arg6[%c0_19, %c0_20, %c0_21] : memref<1x8x32xf32, #tpu.memory_space<vmem>>, vector<1x8x32xf32>
      %39 = vector.shape_cast %38 : vector<1x8x32xf32> to vector<8x32xf32>
      %40 = vector.shape_cast %37 : vector<8x32xf32> to vector<1x8x32xf32>
      tpu.vector_store %arg6[%c0_19, %c0_20, %c0_21], %40 {strides = array<i32>} : memref<1x8x32xf32, #tpu.memory_space<vmem>>, vector<1x8x32xf32>,
    } else {
    }
    return
  }
  func.func @transform_0(%arg0: i32, %arg1: i32) -> (i32, i32, i32) {
    %c0_i32 = arith.constant 0 : i32
    %c0_i32_0 = arith.constant 0 : i32
    %c0_i32_1 = arith.constant 0 : i32
    return %arg0, %c0_i32, %c0_i32_0 : i32, i32, i32
  }
  func.func @transform_1(%arg0: i32, %arg1: i32) -> (i32, i32, i32) {
    %c0_i32 = arith.constant 0 : i32
    %c0_i32_0 = arith.constant 0 : i32
    %c0_i32_1 = arith.constant 0 : i32
    return %arg1, %c0_i32, %c0_i32_0 : i32, i32, i32
  }
  func.func @transform_2(%arg0: i32, %arg1: i32) -> (i32, i32, i32) {
    %c0_i32 = arith.constant 0 : i32
    %c0_i32_0 = arith.constant 0 : i32
    %c0_i32_1 = arith.constant 0 : i32
    return %arg1, %c0_i32, %c0_i32_0 : i32, i32, i32
  }
  func.func @transform_3(%arg0: i32, %arg1: i32) -> (i32, i32) {
    %c0_i32 = arith.constant 0 : i32
    %c0_i32_0 = arith.constant 0 : i32
    %c0_i32_1 = arith.constant 0 : i32
    return %c0_i32, %c0_i32_0 : i32, i32
  }
  func.func @transform_4(%arg0: i32, %arg1: i32) -> (i32, i32, i32) {
    %c0_i32 = arith.constant 0 : i32
    %c0_i32_0 = arith.constant 0 : i32
    %c0_i32_1 = arith.constant 0 : i32
    return %arg0, %c0_i32, %c0_i32_0 : i32, i32, i32
  }
}

</mosaic_0001>

<llo_original>
// kernel: tpu_custom_call.1
$region0: #{tpu_custom_call.1}
  #allocation0 [shape = 'u32[]', space=smem, size = 0x4, offset = 0x4, fixed_abs, tag = 'smem constant byte address 0x4 - core index']
  #allocation1 [shape = 'u32[144,128]{1,0:T(1,128)}', space=vmem, size = 0x12000, scoped, tag = 'internal scratch']
  #allocation2 [shape = 'f32[8,32]{1,0:T(8,128)}', space=vmem, size = 0x1000, scoped, tag = 'scratch operand']
  %s0 = inlined_call_operand.hbm [shape: bf16[2,8,32], index: 0, kind: input, shape index: {}]
  %s1 = inlined_call_operand.hbm [shape: bf16[4,32,48], index: 1, kind: input, shape index: {}]
  %s2 = inlined_call_operand.hbm [shape: bf16[4,16,32], index: 2, kind: input, shape index: {}]
  %s3 = inlined_call_operand.vmem [shape: f32[1,32], index: 3, kind: input, shape index: {}]
  %s4 = inlined_call_operand.hbm [shape: f32[2,8,32], index: 4, kind: output, shape index: {}]
  %s5 = sld [smem:[#allocation0]]
  $region73: #{tpu_custom_call.1} parent=0
    _
  %s7 = ssub.s32 1, %s5
  %s8 = scalar_select 0, %s7, %s5
  $region1: #{tpu_custom_call.1} parent=0
    #allocation3 [shape = 'u8[4096]{0}', space=vmem, size = 0x1000, scoped, tag = 'input window, operand 0']
    #allocation4 [shape = 's32[2]{0}', space=sflag, size = 0x8, scoped, tag = 'scoped memory for tpu_custom_call.1']
    #allocation5 [shape = 's32[2]{0}', space=sflag, size = 0x8, scoped, tag = 'scoped memory for tpu_custom_call.1']
    #allocation6 [shape = 'u8[16384]{0}', space=vmem, size = 0x4000, scoped, tag = 'input window, operand 1']
    #allocation7 [shape = 's32[2]{0}', space=sflag, size = 0x8, scoped, tag = 'scoped memory for tpu_custom_call.1']
    #allocation8 [shape = 'u8[8192]{0}', space=vmem, size = 0x2000, scoped, tag = 'input window, operand 2']
    #allocation9 [shape = 'u8[8192]{0}', space=vmem, size = 0x2000, scoped, tag = 'output window, operand 0']
    %9 = vsyncpa [#allocation4], 0
    %s10 = scalar_lea.sflag [#allocation4], 1
    %11 = vsyncpa %s10, 0
    %12 = vsyncpa [#allocation7], 0
    %s13 = scalar_lea.sflag [#allocation7], 1
    %14 = vsyncpa %s13, 0
    %15 = vsyncpa [#allocation5], 0
    %s16 = scalar_lea.sflag [#allocation5], 1
    %17 = vsyncpa %s16, 0
    loop: start=0, step=1, limit=10
    $region2: #{tpu_custom_call.1} parent=1 // loop_pre_header
      _
    $region3: #{tpu_custom_call.1} parent=1 // loop_header
      %s19 = sphi 0, %s23
      %p20 = scmp.ge.s32.totalorder %s19, 10
      %s26 = sphi 0, %s38
      %s27 = sphi 0, %s34
      %s28 = sphi 0, %s26
      %s29 = sphi 0, %s27
      %s30 = sphi 0, %s28
      %s31 = sphi 0, %s29
      %s41 = sphi 0, %s43
      %s44 = sphi 0, %s41
      %s45 = sphi 0, %s44
      %s61 = sphi 0, %s45
      %s67 = sphi 0, %s69
      %s70 = sphi 0, %s67
      %s71 = sphi 0, %s70
      %s87 = sphi 0, %s71
      %s93 = sphi 0, %s95
      %s96 = sphi 0, %s93
      %s97 = sphi 0, %s96
      %s113 = sphi 0, %s97
      %s117 = sphi 0, %s117
      %s119 = sphi 0, %s117
      %s120 = sphi 0, %s119
      %s134 = sphi 0, %s120
      %s140 = sphi 0, %s142
      %s143 = sphi 0, %s140
      %s144 = sphi 0, %s143
      %s160 = sphi 0, %s144
    $region4: #{tpu_custom_call.1} parent=1 // loop_header_branch
      %22 = sbr.rel (%p20) target = $region8
    $region5: #{tpu_custom_call.1} parent=1 // loop_body
      %s24 = ssub.s32 %s19, 1
      %s25 = ssub.s32 %s19, 2
      %s32 = sadd.s32 1, %s27
      %p33 = scmp.ge.s32.totalorder %s32, 4
      %s34 = scalar_select %p33, 0, %s32
      %s35 = sadd.s32 1, %s26
      %s36 = scalar_select %p33, %s35, %s26
      %p37 = scmp.ge.s32.totalorder %s36, 2
      %s38 = scalar_select %p37, 0, %s36
      %s39 = ssub.s32 %s26, %s38
      %p40 = scmp.eq.s32.totalorder %s39, 0
      %s42 = sadd.s32 %s41, 1
      %s43 = scalar_select %p40, %s41, %s42
      %p46 = pneg %p40
      %p47 = scmp.eq.s32.totalorder %s19, 7
      %p48 = por %p46, %p47
      %p49 = scmp.ne.s32.totalorder %s41, %s44
      %p50 = scmp.eq.s32.totalorder %s19, 0
      %p51 = por %p49, %p50
      %p52 = scmp.ne.s32.totalorder %s41, %s44
      %p53 = scmp.eq.s32.totalorder %s24, 7
      %p54 = por %p52, %p53
      %p55 = scmp.ne.s32.totalorder %s44, %s45
      %p56 = scmp.eq.s32.totalorder %s24, 0
      %p57 = por %p55, %p56
      %p58 = scmp.ne.s32.totalorder %s44, %s45
      %p59 = scmp.eq.s32.totalorder %s25, 7
      %p60 = por %p58, %p59
      %p62 = scmp.ne.s32.totalorder %s45, %s61
      %p63 = scmp.eq.s32.totalorder %s25, 0
      %p64 = por %p62, %p63
      %s65 = ssub.s32 %s27, %s34
      %p66 = scmp.eq.s32.totalorder %s65, 0
      %s68 = sadd.s32 %s67, 1
      %s69 = scalar_select %p66, %s67, %s68
      %p72 = pneg %p66
      %p73 = scmp.eq.s32.totalorder %s19, 7
      %p74 = por %p72, %p73
      %p75 = scmp.ne.s32.totalorder %s67, %s70
      %p76 = scmp.eq.s32.totalorder %s19, 0
      %p77 = por %p75, %p76
      %p78 = scmp.ne.s32.totalorder %s67, %s70
      %p79 = scmp.eq.s32.totalorder %s24, 7
      %p80 = por %p78, %p79
      %p81 = scmp.ne.s32.totalorder %s70, %s71
      %p82 = scmp.eq.s32.totalorder %s24, 0
      %p83 = por %p81, %p82
      %p84 = scmp.ne.s32.totalorder %s70, %s71
      %p85 = scmp.eq.s32.totalorder %s25, 7
      %p86 = por %p84, %p85
      %p88 = scmp.ne.s32.totalorder %s71, %s87
      %p89 = scmp.eq.s32.totalorder %s25, 0
      %p90 = por %p88, %p89
      %s91 = ssub.s32 %s27, %s34
      %p92 = scmp.eq.s32.totalorder %s91, 0
      %s94 = sadd.s32 %s93, 1
      %s95 = scalar_select %p92, %s93, %s94
      %p98 = pneg %p92
      %p99 = scmp.eq.s32.totalorder %s19, 7
      %p100 = por %p98, %p99
      %p101 = scmp.ne.s32.totalorder %s93, %s96
      %p102 = scmp.eq.s32.totalorder %s19, 0
      %p103 = por %p101, %p102
      %p104 = scmp.ne.s32.totalorder %s93, %s96
      %p105 = scmp.eq.s32.totalorder %s24, 7
      %p106 = por %p104, %p105
      %p107 = scmp.ne.s32.totalorder %s96, %s97
      %p108 = scmp.eq.s32.totalorder %s24, 0
      %p109 = por %p107, %p108
      %p110 = scmp.ne.s32.totalorder %s96, %s97
      %p111 = scmp.eq.s32.totalorder %s25, 7
      %p112 = por %p110, %p111
      %p114 = scmp.ne.s32.totalorder %s97, %s113
      %p115 = scmp.eq.s32.totalorder %s25, 0
      %p116 = por %p114, %p115
      %s118 = sadd.s32 %s117, 1
      %p121 = scmp.eq.s32.totalorder %s19, 7
      %p122 = scmp.ne.s32.totalorder %s117, %s119
      %p123 = scmp.eq.s32.totalorder %s19, 0
      %p124 = por %p122, %p123
      %p125 = scmp.ne.s32.totalorder %s117, %s119
      %p126 = scmp.eq.s32.totalorder %s24, 7
      %p127 = por %p125, %p126
      %p128 = scmp.ne.s32.totalorder %s119, %s120
      %p129 = scmp.eq.s32.totalorder %s24, 0
      %p130 = por %p128, %p129
      %p131 = scmp.ne.s32.totalorder %s119, %s120
      %p132 = scmp.eq.s32.totalorder %s25, 7
      %p133 = por %p131, %p132
      %p135 = scmp.ne.s32.totalorder %s120, %s134
      %p136 = scmp.eq.s32.totalorder %s25, 0
      %p137 = por %p135, %p136
      %s138 = ssub.s32 %s26, %s38
      %p139 = scmp.eq.s32.totalorder %s138, 0
      %s141 = sadd.s32 %s140, 1
      %s142 = scalar_select %p139, %s140, %s141
      %p145 = pneg %p139
      %p146 = scmp.eq.s32.totalorder %s19, 7
      %p147 = por %p145, %p146
      %p148 = scmp.ne.s32.totalorder %s140, %s143
      %p149 = scmp.eq.s32.totalorder %s19, 0
      %p150 = por %p148, %p149
      %p151 = scmp.ne.s32.totalorder %s140, %s143
      %p152 = scmp.eq.s32.totalorder %s24, 7
      %p153 = por %p151, %p152
      %p154 = scmp.ne.s32.totalorder %s143, %s144
      %p155 = scmp.eq.s32.totalorder %s24, 0
      %p156 = por %p154, %p155
      %p157 = scmp.ne.s32.totalorder %s143, %s144
      %p158 = scmp.eq.s32.totalorder %s25, 7
      %p159 = por %p157, %p158
      %p161 = scmp.ne.s32.totalorder %s144, %s160
      %p162 = scmp.eq.s32.totalorder %s25, 0
      %p163 = por %p161, %p162
      %p164 = scmp.le.s32.totalorder 1, %s19
      %p165 = scmp.lt.s32.totalorder %s19, 9
      %p166 = pnand %p164, %p165
      %p167 = pneg %p166
      // Predicated region
      $region9: #{tpu_custom_call.1} parent=5 // pred_check
        _
      $region10: #{tpu_custom_call.1} parent=5 // pred_check_branch
        %169 = sbr.rel (%p166) target = $region12
      $region11: #{tpu_custom_call.1} parent=5 // pred_region
        %s170 = ssub.s32 %s19, 1
        // Predicated region
        $region13: #{tpu_custom_call.1} parent=11 // pred_check
          %p171 = pneg %p130
        $region14: #{tpu_custom_call.1} parent=11 // pred_check_branch
          %173 = sbr.rel (%p171) target = $region16
        $region15: #{tpu_custom_call.1} parent=11 // pred_region
          _
        $region16: #{tpu_custom_call.1} parent=11 // pred_fallthru
          _
      $region12: #{tpu_custom_call.1} parent=5 // pred_fallthru
        _
      %p174 = scmp.lt.s32.totalorder %s19, 8
      // Predicated region
      $region17: #{tpu_custom_call.1} parent=5 // pred_check
        %p175 = pneg %p174
      $region18: #{tpu_custom_call.1} parent=5 // pred_check_branch
        %177 = sbr.rel (%p175) target = $region20
      $region19: #{tpu_custom_call.1} parent=5 // pred_region
        // Predicated region
        $region21: #{tpu_custom_call.1} parent=19 // pred_check
          %p178 = pneg %p51
        $region22: #{tpu_custom_call.1} parent=19 // pred_check_branch
          %180 = sbr.rel (%p178) target = $region24
        $region23: #{tpu_custom_call.1} parent=19 // pred_region
          %s181 = sand.u32 %s41, 1
          %s182 = scalar_lea.sflag [#allocation4], %s181
          %s183 = sand.u32 %s41, 1
          %s184 = smul.addr %s183, 4
          %s185 = scalar_lea.vmem [#allocation3], %s184
          %s187 = ssub.s32 64, 64
          %188 = vsyncadd %s182, %s187
          %s189 = smul.addr %s26, 64
          %s190 = scalar_lea.hbm %s0, %s189
          %s192 = sshll.u32 %s185, 4
          %s193 = int_to_ptr.vmem [resolvable:$true] %s192
          %195 = dma.hbm_to_vmem [thread:$0]  %s190, 64, %s193, %s182
        $region24: #{tpu_custom_call.1} parent=19 // pred_fallthru
          _
        // Predicated region
        $region25: #{tpu_custom_call.1} parent=19 // pred_check
          %p196 = pneg %p77
        $region26: #{tpu_custom_call.1} parent=19 // pred_check_branch
          %198 = sbr.rel (%p196) target = $region28
        $region27: #{tpu_custom_call.1} parent=19 // pred_region
          %s199 = sand.u32 %s19, 1
          %s200 = scalar_lea.sflag [#allocation7], %s199
          %s201 = sand.u32 %s67, 1
          %s202 = smul.addr %s201, 16
          %s203 = scalar_lea.vmem [#allocation6], %s202
          %s205 = ssub.s32 256, 256
          %206 = vsyncadd %s200, %s205
          %s207 = smul.addr %s27, 4
          %s208 = smul.addr %s207, 64
          %s209 = scalar_lea.hbm %s1, %s208
          %s210 = sshll.u32 %s203, 4
          %s211 = int_to_ptr.vmem [resolvable:$true] %s210
          %216 = dma.hbm_to_vmem [thread:$0]  %s209, 256, %s211, %s200, 64, 64, 4
        $region28: #{tpu_custom_call.1} parent=19 // pred_fallthru
          _
        // Predicated region
        $region29: #{tpu_custom_call.1} parent=19 // pred_check
          %p217 = pneg %p103
        $region30: #{tpu_custom_call.1} parent=19 // pred_check_branch
          %219 = sbr.rel (%p217) target = $region32
        $region31: #{tpu_custom_call.1} parent=19 // pred_region
          %s220 = sand.u32 %s19, 1
          %s221 = scalar_lea.sflag [#allocation7], %s220
          %s222 = sand.u32 %s93, 1
          %s223 = smul.addr %s222, 8
          %s224 = scalar_lea.vmem [#allocation8], %s223
          %s226 = ssub.s32 128, 128
          %227 = vsyncadd %s221, %s226
          %s228 = smul.addr %s27, 2
          %s229 = smul.addr %s228, 64
          %s230 = scalar_lea.hbm %s2, %s229
          %s231 = sshll.u32 %s224, 4
          %s232 = int_to_ptr.vmem [resolvable:$true] %s231
          %237 = dma.hbm_to_vmem [thread:$0]  %s230, 128, %s232, %s221, 64, 64, 4
        $region32: #{tpu_custom_call.1} parent=19 // pred_fallthru
          _
      $region20: #{tpu_custom_call.1} parent=5 // pred_fallthru
        _
      %p238 = scmp.le.s32.totalorder 1, %s19
      %p239 = scmp.lt.s32.totalorder %s19, 9
      %p240 = pnand %p238, %p239
      %p241 = pneg %p240
      // Predicated region
      $region33: #{tpu_custom_call.1} parent=5 // pred_check
        _
      $region34: #{tpu_custom_call.1} parent=5 // pred_check_branch
        %243 = sbr.rel (%p240) target = $region36
      $region35: #{tpu_custom_call.1} parent=5 // pred_region
        %s244 = ssub.s32 %s19, 1
        %s245 = sand.u32 %s44, 1
        %s246 = scalar_lea.sflag [#allocation4], %s245
        %s247 = sand.u32 %s44, 1
        %s248 = smul.addr %s247, 4
        %s249 = scalar_lea.vmem [#allocation3], %s248
        // Predicated region
        $region37: #{tpu_custom_call.1} parent=35 // pred_check
          %p250 = pneg %p57
        $region38: #{tpu_custom_call.1} parent=35 // pred_check_branch
          %252 = sbr.rel (%p250) target = $region40
        $region39: #{tpu_custom_call.1} parent=35 // pred_region
          %253 = dma.done %s246, 64
        $region40: #{tpu_custom_call.1} parent=35 // pred_fallthru
          _
        %s254 = sand.u32 %s24, 1
        %s255 = scalar_lea.sflag [#allocation7], %s254
        %s256 = sand.u32 %s70, 1
        %s257 = smul.addr %s256, 16
        %s258 = scalar_lea.vmem [#allocation6], %s257
        // Predicated region
        $region41: #{tpu_custom_call.1} parent=35 // pred_check
          %p259 = pneg %p83
        $region42: #{tpu_custom_call.1} parent=35 // pred_check_branch
          %261 = sbr.rel (%p259) target = $region44
        $region43: #{tpu_custom_call.1} parent=35 // pred_region
          %262 = dma.done %s255, 256
        $region44: #{tpu_custom_call.1} parent=35 // pred_fallthru
          _
        %s263 = sand.u32 %s24, 1
        %s264 = scalar_lea.sflag [#allocation7], %s263
        %s265 = sand.u32 %s96, 1
        %s266 = smul.addr %s265, 8
        %s267 = scalar_lea.vmem [#allocation8], %s266
        // Predicated region
        $region45: #{tpu_custom_call.1} parent=35 // pred_check
          %p268 = pneg %p109
        $region46: #{tpu_custom_call.1} parent=35 // pred_check_branch
          %270 = sbr.rel (%p268) target = $region48
        $region47: #{tpu_custom_call.1} parent=35 // pred_region
          %271 = dma.done %s264, 128
        $region48: #{tpu_custom_call.1} parent=35 // pred_fallthru
          _
        %s272 = sand.u32 %s44, 1
        %s273 = scalar_lea.sflag [#allocation4], %s272
        %s274 = sand.u32 %s44, 1
        %s275 = smul.addr %s274, 4
        %s276 = scalar_lea.vmem [#allocation3], %s275
        %p277 = pneg %p57
        %p278 = pneg %p54
        %s279 = sand.u32 %s24, 1
        %s280 = scalar_lea.sflag [#allocation7], %s279
        %s281 = sand.u32 %s70, 1
        %s282 = smul.addr %s281, 16
        %s283 = scalar_lea.vmem [#allocation6], %s282
        %p284 = pneg %p83
        %p285 = pneg %p80
        %s286 = sand.u32 %s24, 1
        %s287 = scalar_lea.sflag [#allocation7], %s286
        %s288 = sand.u32 %s96, 1
        %s289 = smul.addr %s288, 8
        %s290 = scalar_lea.vmem [#allocation8], %s289
        %p291 = pneg %p109
        %p292 = pneg %p106
        %p293 = pneg %p130
        %p294 = pneg %p127
        %p295 = pneg %p156
        %p296 = pneg %p153
        %s297 = sand.u32 %s143, 1
        %s298 = scalar_lea.sflag [#allocation5], %s297
        %s299 = sand.u32 %s143, 1
        %s300 = smul.addr %s299, 8
        %s301 = scalar_lea.vmem [#allocation9], %s300
        %v303 = vld [vmem:[%s249] sm:$0xf]
        %v304 = vld [vmem:[%s258] sm:$0xf]
        %v305 = vld [vmem:[%s258 + $0x4] sm:$0xf]
        %v306 = vld [vmem:[%s258 + $0x8] sm:$0xf]
        %v307 = vld [vmem:[%s258 + $0xc] sm:$0xf]
        %v312 = vunpack.c.l.b16 %v304
        %v313 = vunpack.c.l.b16 %v305
        %v314 = vunpack.c.l.b16 %v306
        %v315 = vunpack.c.l.b16 %v307
        %v316 = vpack.c.b16 %v313, %v312
        %v317 = vpack.c.b16 %v315, %v314
        %vm320 = vcmask 261120
        %v322 = vsel %vm320, %v303, 0
        %324 = vmatprep.subr.bf16.mxu0 0
        %325 = vmatpush1.bf16.msra.mxu0 0
        %326 = vmatprep.subr.bf16.mxu0 0
        %327 = vmatpush1.bf16.msra.mxu0 0
        %328 = vmatprep.subr.bf16.mxu0 0
        %329 = vmatpush1.bf16.msra.mxu0 0
        %330 = vmatprep.subr.bf16.mxu0 0
        %331 = vmatpush1.bf16.msra.mxu0 0
        %332 = vmatprep.subr.bf16.mxu0 0
        %333 = vmatpush1.bf16.msra.mxu0 0
        %334 = vmatprep.subr.bf16.mxu0 0
        %335 = vmatpush1.bf16.msra.mxu0 0
        %336 = vmatprep.subr.bf16.mxu0 0
        %337 = vmatpush1.bf16.msra.mxu0 %v317
        %338 = vmatprep.subr.bf16.mxu0 0
        %339 = vmatpush1.bf16.msra.mxu0 %v316
        %340 = vmatprep.subr.bf16.mxu0 0
        %341 = vmatpush2.bf16.msra.mxu0 0
        %342 = vmatprep.subr.bf16.mxu0 0
        %343 = vmatpush2.bf16.msra.mxu0 0
        %344 = vmatprep.subr.bf16.mxu0 0
        %345 = vmatpush2.bf16.msra.mxu0 0
        %346 = vmatprep.subr.bf16.mxu0 0
        %347 = vmatpush2.bf16.msra.mxu0 0
        %348 = vmatprep.subr.bf16.mxu0 0
        %349 = vmatpush2.bf16.msra.mxu0 0
        %350 = vmatprep.subr.bf16.mxu0 0
        %351 = vmatpush2.bf16.msra.mxu0 0
        %352 = vmatprep.subr.bf16.mxu0 0
        %353 = vmatpush2.bf16.msra.mxu0 0
        %354 = vmatprep.subr.bf16.mxu0 0
        %355 = vmatpush2.bf16.msra.mxu0 0
        %356 = vmatprep.mubr.bf16.mxu0 0
        %357 = vmatmul.mubr.bf16.gmra.mxu0 %v322
        %v358 = vpop.f32.mrf.mxu0
        %v359 = vadd.f32 0.0, %v358
        %v360 = vpop.f32.mrf.mxu0
        %v361 = vpop.f32.mrf.mxu0
        %v362 = vpop.f32.mrf.mxu0
        %363 = vdwg.mxu0
        %v364 = vpack.c.bf16 %v359, %v359
        %366 = vrot.lane.b32.xlu0 %v364, 112
        %v367 = vpop.permute.xlu0 %366
        %vm368 = vcmask 130048
        %v370 = vsel %vm368, %v364, 0
        %v373 = vsel %vm368, %v367, 0
        %375 = vmatprep.subr.bf16.mxu0 0
        %376 = vmatpush1.bf16.xpose.msra.mxu0 0
        %377 = vmatprep.subr.bf16.mxu0 0
        %378 = vmatpush1.bf16.xpose.msra.mxu0 0
        %379 = vmatprep.subr.bf16.mxu0 0
        %380 = vmatpush1.bf16.xpose.msra.mxu0 0
        %381 = vmatprep.subr.bf16.mxu0 0
        %382 = vmatpush1.bf16.xpose.msra.mxu0 0
        %383 = vmatprep.subr.bf16.mxu0 0
        %384 = vmatpush1.bf16.xpose.msra.mxu0 0
        %385 = vmatprep.subr.bf16.mxu0 0
        %386 = vmatpush1.bf16.xpose.msra.mxu0 0
        %387 = vmatprep.subr.bf16.mxu0 0
        %388 = vmatpush1.bf16.xpose.msra.mxu0 0
        %389 = vmatprep.subr.bf16.mxu0 0
        %390 = vmatpush1.bf16.xpose.msra.mxu0 %v373
        %391 = vmatprep.subr.bf16.mxu0 0
        %392 = vmatpush2.bf16.xpose.msra.mxu0 0
        %393 = vmatprep.subr.bf16.mxu0 0
        %394 = vmatpush2.bf16.xpose.msra.mxu0 0
        %395 = vmatprep.subr.bf16.mxu0 0
        %396 = vmatpush2.bf16.xpose.msra.mxu0 0
        %397 = vmatprep.subr.bf16.mxu0 0
        %398 = vmatpush2.bf16.xpose.msra.mxu0 0
        %399 = vmatprep.subr.bf16.mxu0 0
        %400 = vmatpush2.bf16.xpose.msra.mxu0 0
        %401 = vmatprep.subr.bf16.mxu0 0
        %402 = vmatpush2.bf16.xpose.msra.mxu0 0
        %403 = vmatprep.subr.bf16.mxu0 0
        %404 = vmatpush2.bf16.xpose.msra.mxu0 0
        %405 = vmatprep.subr.bf16.mxu0 0
        %406 = vmatpush2.bf16.xpose.msra.mxu0 0
        %407 = vmatprep.mubr.bf16.mxu0 0
        %408 = vmatmul.mubr.bf16.gmra.mxu0 %v370
        %v409 = vpop.f32.mrf.mxu0
        %v410 = vadd.f32 0.0, %v409
        %v411 = vpop.f32.mrf.mxu0
        %v412 = vpop.f32.mrf.mxu0
        %v413 = vpop.f32.mrf.mxu0
        %414 = vdwg.mxu0
        %vm415 = vcmask 64512
        %v416 = vsel %vm415, %v410, -inf
        %417 = vmax.xlane.f32.xlu0 %v416
        %v418 = vpop.xlane.xlu0 %417
        %v419 = vsub.f32 %v410, %v418
        %v420 = vmul.f32 %v419, 1.442695
        %v421 = vpow.pop %v420
        %v422 = vsel %vm415, %v421, 0.0
        %423 = vadd.xlane.f32.xlu0 %v422
        %v424 = vpop.xlane.xlu0 %423
        %v425 = vpack.c.bf16 %v421, %v421
        %426 = vrot.lane.b32.xlu0 %v364, 96
        %v427 = vpop.permute.xlu0 %426
        %v429 = vsel %vm415, %v425, 0
        %vm431 = vcmask 1043456
        %v433 = vsel %vm431, %v427, 0
        %435 = vmatprep.subr.bf16.mxu0 0
        %436 = vmatpush1.bf16.msra.mxu0 0
        %437 = vmatprep.subr.bf16.mxu0 0
        %438 = vmatpush1.bf16.msra.mxu0 0
        %439 = vmatprep.subr.bf16.mxu0 0
        %440 = vmatpush1.bf16.msra.mxu0 0
        %441 = vmatprep.subr.bf16.mxu0 0
        %442 = vmatpush1.bf16.msra.mxu0 0
        %443 = vmatprep.subr.bf16.mxu0 0
        %444 = vmatpush1.bf16.msra.mxu0 0
        %445 = vmatprep.subr.bf16.mxu0 0
        %446 = vmatpush1.bf16.msra.mxu0 0
        %447 = vmatprep.subr.bf16.mxu0 0
        %448 = vmatpush1.bf16.msra.mxu0 0
        %449 = vmatprep.subr.bf16.mxu0 0
        %450 = vmatpush1.bf16.msra.mxu0 %v433
        %451 = vmatprep.subr.bf16.mxu0 0
        %452 = vmatpush2.bf16.msra.mxu0 0
        %453 = vmatprep.subr.bf16.mxu0 0
        %454 = vmatpush2.bf16.msra.mxu0 0
        %455 = vmatprep.subr.bf16.mxu0 0
        %456 = vmatpush2.bf16.msra.mxu0 0
        %457 = vmatprep.subr.bf16.mxu0 0
        %458 = vmatpush2.bf16.msra.mxu0 0
        %459 = vmatprep.subr.bf16.mxu0 0
        %460 = vmatpush2.bf16.msra.mxu0 0
        %461 = vmatprep.subr.bf16.mxu0 0
        %462 = vmatpush2.bf16.msra.mxu0 0
        %463 = vmatprep.subr.bf16.mxu0 0
        %464 = vmatpush2.bf16.msra.mxu0 0
        %465 = vmatprep.subr.bf16.mxu0 0
        %466 = vmatpush2.bf16.msra.mxu0 0
        %467 = vmatprep.mubr.bf16.mxu0 0
        %468 = vmatmul.mubr.bf16.gmra.mxu0 %v429
        %v469 = vpop.f32.mrf.mxu0
        %v470 = vadd.f32 0.0, %v469
        %v471 = vpop.f32.mrf.mxu0
        %v472 = vpop.f32.mrf.mxu0
        %v473 = vpop.f32.mrf.mxu0
        %474 = vdwg.mxu0
        %v475 = vrcp.pop %v424
        %v476 = vmul.f32 %v470, %v475
        %v477 = vpack.c.bf16 %v476, %v476
        %v478 = vld [vmem:[%s267] sm:$0xf]
        %v479 = vld [vmem:[%s267 + $0x4] sm:$0xf]
        %v482 = vunpack.c.l.b16 %v478
        %v483 = vunpack.c.l.b16 %v479
        %v484 = vpack.c.b16 %v483, %v482
        %v487 = vsel %vm368, %v477, 0
        %489 = vmatprep.subr.bf16.mxu0 0
        %490 = vmatpush1.bf16.msra.mxu0 0
        %491 = vmatprep.subr.bf16.mxu0 0
        %492 = vmatpush1.bf16.msra.mxu0 0
        %493 = vmatprep.subr.bf16.mxu0 0
        %494 = vmatpush1.bf16.msra.mxu0 0
        %495 = vmatprep.subr.bf16.mxu0 0
        %496 = vmatpush1.bf16.msra.mxu0 0
        %497 = vmatprep.subr.bf16.mxu0 0
        %498 = vmatpush1.bf16.msra.mxu0 0
        %499 = vmatprep.subr.bf16.mxu0 0
        %500 = vmatpush1.bf16.msra.mxu0 0
        %501 = vmatprep.subr.bf16.mxu0 0
        %502 = vmatpush1.bf16.msra.mxu0 0
        %503 = vmatprep.subr.bf16.mxu0 0
        %504 = vmatpush1.bf16.msra.mxu0 %v484
        %505 = vmatprep.subr.bf16.mxu0 0
        %506 = vmatpush2.bf16.msra.mxu0 0
        %507 = vmatprep.subr.bf16.mxu0 0
        %508 = vmatpush2.bf16.msra.mxu0 0
        %509 = vmatprep.subr.bf16.mxu0 0
        %510 = vmatpush2.bf16.msra.mxu0 0
        %511 = vmatprep.subr.bf16.mxu0 0
        %512 = vmatpush2.bf16.msra.mxu0 0
        %513 = vmatprep.subr.bf16.mxu0 0
        %514 = vmatpush2.bf16.msra.mxu0 0
        %515 = vmatprep.subr.bf16.mxu0 0
        %516 = vmatpush2.bf16.msra.mxu0 0
        %517 = vmatprep.subr.bf16.mxu0 0
        %518 = vmatpush2.bf16.msra.mxu0 0
        %519 = vmatprep.subr.bf16.mxu0 0
        %520 = vmatpush2.bf16.msra.mxu0 0
        %521 = vmatprep.mubr.bf16.mxu0 0
        %522 = vmatmul.mubr.bf16.gmra.mxu0 %v487
        %v523 = vpop.f32.mrf.mxu0
        %v524 = vadd.f32 0.0, %v523
        %v525 = vpop.f32.mrf.mxu0
        %v526 = vpop.f32.mrf.mxu0
        %v527 = vpop.f32.mrf.mxu0
        %528 = vdwg.mxu0
        %p529 = scmp.eq.s32.totalorder %s29, 0
        // Predicated region
        $region49: #{tpu_custom_call.1} parent=35 // pred_check
          %p530 = pneg %p529
        $region50: #{tpu_custom_call.1} parent=35 // pred_check_branch
          %532 = sbr.rel (%p530) target = $region52
        $region51: #{tpu_custom_call.1} parent=35 // pred_region
          %v533 = vld [vmem:[%s3] sm:$0x1]
          %v535 = vlaneseq
          %v536 = vshrl.u32 %v535, 7
          %v537 = vsub.s32 0, %v536
          %v538 = vrot.slane %v533, %v537
          %v540 = vadd.f32 %v538, %v524
          %541 = vst.msk [vmem:[#allocation2] sm:$0xff] %vm320, %v540
        $region52: #{tpu_custom_call.1} parent=35 // pred_fallthru
          _
        %p542 = scmp.ne.s32.totalorder %s29, 0
        // Predicated region
        $region53: #{tpu_custom_call.1} parent=35 // pred_check
          %p543 = pneg %p542
        $region54: #{tpu_custom_call.1} parent=35 // pred_check_branch
          %545 = sbr.rel (%p543) target = $region56
        $region55: #{tpu_custom_call.1} parent=35 // pred_region
          %v546 = vld [vmem:[#allocation2] sm:$0xff]
          %v547 = vadd.f32 %v546, %v524
          %548 = vst.msk [vmem:[#allocation2] sm:$0xff] %vm320, %v547
        $region56: #{tpu_custom_call.1} parent=35 // pred_fallthru
          _
        %p549 = scmp.eq.s32.totalorder %s29, 3
        // Predicated region
        $region57: #{tpu_custom_call.1} parent=35 // pred_check
          %p550 = pneg %p549
        $region58: #{tpu_custom_call.1} parent=35 // pred_check_branch
          %552 = sbr.rel (%p550) target = $region60
        $region59: #{tpu_custom_call.1} parent=35 // pred_region
          %v553 = vld [vmem:[#allocation2] sm:$0xff]
          %554 = vst.msk [vmem:[%s301] sm:$0xff] %vm320, %v553
        $region60: #{tpu_custom_call.1} parent=35 // pred_fallthru
          _
        %s555 = sand.u32 %s143, 1
        %s556 = scalar_lea.sflag [#allocation5], %s555
        %s557 = sand.u32 %s143, 1
        %s558 = smul.addr %s557, 8
        %s559 = scalar_lea.vmem [#allocation9], %s558
        // Predicated region
        $region61: #{tpu_custom_call.1} parent=35 // pred_check
          %p560 = pneg %p153
        $region62: #{tpu_custom_call.1} parent=35 // pred_check_branch
          %562 = sbr.rel (%p560) target = $region64
        $region63: #{tpu_custom_call.1} parent=35 // pred_region
          %s564 = ssub.s32 128, 128
          %565 = vsyncadd %s556, %s564
          %s566 = smul.addr %s28, 128
          %s567 = scalar_lea.hbm %s4, %s566
          %s569 = sshll.u32 %s559, 4
          %s570 = int_to_ptr.vmem [resolvable:$true] %s569
          %572 = dma.vmem_to_hbm [thread:$0]  %s570, 128, %s567, %s556
        $region64: #{tpu_custom_call.1} parent=35 // pred_fallthru
          _
      $region36: #{tpu_custom_call.1} parent=5 // pred_fallthru
        _
      %p573 = scmp.le.s32.totalorder 2, %s19
      // Predicated region
      $region65: #{tpu_custom_call.1} parent=5 // pred_check
        %p574 = pneg %p573
      $region66: #{tpu_custom_call.1} parent=5 // pred_check_branch
        %576 = sbr.rel (%p574) target = $region68
      $region67: #{tpu_custom_call.1} parent=5 // pred_region
        %s577 = ssub.s32 %s19, 2
        // Predicated region
        $region69: #{tpu_custom_call.1} parent=67 // pred_check
          %p578 = pneg %p159
        $region70: #{tpu_custom_call.1} parent=67 // pred_check_branch
          %580 = sbr.rel (%p578) target = $region72
        $region71: #{tpu_custom_call.1} parent=67 // pred_region
          %s581 = sand.u32 %s144, 1
          %s582 = scalar_lea.sflag [#allocation5], %s581
          %s583 = sand.u32 %s144, 1
          %s584 = smul.addr %s583, 8
          %s585 = scalar_lea.vmem [#allocation9], %s584
          %586 = dma.done %s582, 128
        $region72: #{tpu_custom_call.1} parent=67 // pred_fallthru
          _
      $region68: #{tpu_custom_call.1} parent=5 // pred_fallthru
        _
    $region6: #{tpu_custom_call.1} parent=1 // loop_footer
      %s23 = sadd.s32 1, %s19
    $region7: #{tpu_custom_call.1} parent=1 // loop_footer_branch
      %18 = sbr.rel target = $region3
    $region8: #{tpu_custom_call.1} parent=1 // loop_exit
      _
    %587 = vsyncpa [#allocation4], 1
    %s588 = scalar_lea.sflag [#allocation4], 1
    %589 = vsyncpa %s588, 1
    %590 = vsyncpa [#allocation7], 1
    %s591 = scalar_lea.sflag [#allocation7], 1
    %592 = vsyncpa %s591, 1
    %593 = vsyncpa [#allocation5], 1
    %s594 = scalar_lea.sflag [#allocation5], 1
    %595 = vsyncpa %s594, 1

</llo_original>
